<compile_context>
chip_gen: v7x
topology: tpu7x:2x2x1
jax: 0.10.0
libtpu: 0.0.40
codegen_flags: <defaults>
</compile_context>

<pallas_src>
import math

import jax
import jax.numpy as jnp
from jax.experimental import pallas as pl
from jax.experimental.pallas import tpu as pltpu


def _round_up(x, m):
    return ((x + m - 1) // m) * m


def _block_diag(m, p):
    """(a, b) -> (p*a, p*b) block-diagonal with `m` repeated on the diagonal."""
    if p == 1:
        return m
    a, b = m.shape
    eye = jnp.eye(p, dtype=m.dtype)
    return (eye[:, None, :, None] * m[None, :, None, :]).reshape(p * a, p * b)


def nn_fc_kernel(x_ref, w1_ref, b1_ref, w2_ref, b2_ref, o_ref):
    # Linear 1 (+bias, ReLU) and Linear 2 (+bias), both on the MXU, f32 accum.
    h = jnp.dot(
        x_ref[...].astype(jnp.float32),
        w1_ref[...],
        preferred_element_type=jnp.float32,
    )
    h = jnp.maximum(h + b1_ref[...], 0.0)
    y = jnp.dot(h, w2_ref[...], preferred_element_type=jnp.float32)
    y = y + b2_ref[...]
    o_ref[...] = y.astype(o_ref.dtype)


def nn_fc_forward(x, params, in_shape, tile_rows=None, out_dtype=jnp.float32):
    """NN_FC forward.

    params = (w1, b1, w2, b2) in matmul-ready (in, out) layout:
      w1: (D_in, 3)    == PyTorch net1.weight.T     (D_in == in_shape[2])
      b1: (1, 3) or (3,)
      w2: (3, D_out)   == PyTorch net2.weight.T     (D_out == C*H*W//2)
      b2: (1, D_out) or (D_out,)
    PyTorch-native (out, in) weights must be transposed by the caller.
    """
    w1, b1, w2, b2 = params
    C, H, W = in_shape
    B = x.shape[0]

    x2d = x.reshape(B, -1)
    if x2d.dtype not in (jnp.float32, jnp.bfloat16):
        x2d = x2d.astype(jnp.float32)

    D_in = x2d.shape[1]
    n_hidden = w1.shape[1]
    D_out = w2.shape[1]
    if w1.shape[0] != D_in:
        raise ValueError(
            f"w1 must be (D_in={D_in}, hidden); got {w1.shape} "
            "(did you forget to transpose the PyTorch weight?)")
    if w2.shape[0] != n_hidden:
        raise ValueError(f"w2 must be (hidden={n_hidden}, D_out); got {w2.shape}")
    if D_out != C * H * W // 2:
        raise ValueError(f"w2 out-dim {D_out} != C*H*W//2 = {C * H * W // 2}")

    w1 = w1.astype(jnp.float32)
    b1 = b1.reshape(1, n_hidden).astype(jnp.float32)
    w2 = w2.astype(jnp.float32)
    b2 = b2.reshape(1, D_out).astype(jnp.float32)

    # Row-packing factor: pack P batch rows per kernel row so the output's last
    # dim (P*D_out) is a multiple of 128 (lane-dense, unmasked stores, no write
    # amplification).  Fall back to P=1 (full-extent last dim, masked stores)
    # if that would require an unreasonably large P.
    if D_out % 128 == 0:
        P = 1
    else:
        P = 128 // math.gcd(D_out, 128)
        if P > 16:
            P = 1

    # Pack weights once (tiny): block-diagonal so both linears remain plain
    # matmuls in packed space.
    w1p = _block_diag(w1, P)                 # (P*D_in, P*hidden)
    b1p = jnp.tile(b1, (1, P))               # (1, P*hidden)
    w2p = _block_diag(w2, P)                 # (P*hidden, P*D_out)
    b2p = jnp.tile(b2, (1, P))               # (1, P*D_out)

    # Pack the batch: a free reshape view when B % P == 0 (pads at most P-1
    # rows otherwise).
    B_p = _round_up(B, P)
    if B_p != B:
        x2d = jnp.pad(x2d, ((0, B_p - B), (0, 0)))
    rows = B_p // P
    x_packed = x2d.reshape(rows, P * D_in)

    din_p = P * D_in
    nh_p = P * n_hidden
    dout_p = P * D_out
    out_dtype = jnp.dtype(out_dtype)

    # --- tile sizing with lane-padded VMEM accounting -----------------------
    x_row_vmem = _round_up(din_p, 128) * x_packed.dtype.itemsize
    o_row_vmem = _round_up(dout_p, 128) * out_dtype.itemsize
    if tile_rows is None:
        block_budget = 12 * 1024 * 1024      # double-buffered x + out blocks
        tile_rows = block_budget // (2 * (x_row_vmem + o_row_vmem))
        tile_rows = max(8, min(4096, (tile_rows // 8) * 8))
    else:
        tile_rows = max(8, (tile_rows // 8) * 8)
    # Keep at least 2 grid steps so the "parallel" batch axis can shard across
    # both TensorCores on v7x.
    if rows > 8:
        tile_rows = min(tile_rows, max(8, _round_up(pl.cdiv(rows, 2), 8)))
    tile_rows = min(tile_rows, _round_up(rows, 8))

    num_blocks = pl.cdiv(rows, tile_rows)    # ragged last block handled by Pallas

    weight_vmem = (
        _round_up(din_p, 8) * _round_up(nh_p, 128) * 4
        + _round_up(nh_p, 128) * 4
        + _round_up(nh_p, 8) * _round_up(dout_p, 128) * 4
        + _round_up(dout_p, 128) * 4
    )
    vmem_limit = 2 * tile_rows * (x_row_vmem + o_row_vmem) + 2 * weight_vmem + (2 << 20)
    vmem_limit = int(min(max(vmem_limit, 16 << 20), 32 << 20))

    out_packed = pl.pallas_call(
        nn_fc_kernel,
        out_shape=jax.ShapeDtypeStruct((rows, dout_p), out_dtype),
        grid=(num_blocks,),
        in_specs=[
            pl.BlockSpec((tile_rows, din_p), lambda i: (i, 0)),   # x: batch-tiled
            pl.BlockSpec((din_p, nh_p), lambda i: (0, 0)),        # w1: resident
            pl.BlockSpec((1, nh_p), lambda i: (0, 0)),            # b1: resident
            pl.BlockSpec((nh_p, dout_p), lambda i: (0, 0)),       # w2: resident
            pl.BlockSpec((1, dout_p), lambda i: (0, 0)),          # b2: resident
        ],
        out_specs=pl.BlockSpec((tile_rows, dout_p), lambda i: (i, 0)),
        compiler_params=pltpu.CompilerParams(
            dimension_semantics=("parallel",),
            vmem_limit_bytes=vmem_limit,
        ),
    )(x_packed, w1p, b1p, w2p, b2p)

    # Unpack: a metadata-only view when B % P == 0 (no post-kernel copy).
    out2d = out_packed.reshape(B_p, D_out)
    if B_p != B:
        out2d = out2d[:B]
    return out2d.reshape(B, C // 2, H, W)


def init_params(key, in_shape):
    """Deterministic synthetic parameters with the module's shapes, already in
    matmul-ready (in, out) layout."""
    C, H, W = in_shape
    intermediate = 3
    d_out = C * H * W // 2
    k1, k2, k3, k4 = jax.random.split(key, 4)
    w1 = jax.random.normal(k1, (W, intermediate), jnp.float32) * 0.1
    b1 = jax.random.normal(k2, (1, intermediate), jnp.float32) * 0.1
    w2 = jax.random.normal(k3, (intermediate, d_out), jnp.float32) * 0.1
    b2 = jax.random.normal(k4, (1, d_out), jnp.float32) * 0.1
    return (w1, b1, w2, b2)


def nn_fc_reference(x, params, in_shape):
    """Pure-JAX reference for verification."""
    B = x.shape[0]
    w1, b1, w2, b2 = params
    h = jnp.maximum(x.reshape(B, -1).astype(jnp.float32) @ w1 + b1, 0.0)
    y = h @ w2 + b2
    C, H, W = in_shape
    return y.reshape(B, C // 2, H, W)


if __name__ == "__main__":
    key = jax.random.PRNGKey(0)
    in_shape = (4, 4, 8)          # (C, H, W) -> net1 in-dim = 8, net2 out-dim = 64
    kx, kp = jax.random.split(key)
    params = init_params(kp, in_shape)

    # Small case matching the module's expected input (flattens to in_shape[2]).
    B = 2
    x = jax.random.normal(kx, (B, in_shape[2]), jnp.float32)
    out = jax.block_until_ready(nn_fc_forward(x, params, in_shape))
    ref = nn_fc_reference(x, params, in_shape)
    assert out.shape == (B, in_shape[0] // 2, in_shape[1], in_shape[2])
    assert jnp.allclose(out, ref, atol=1e-5, rtol=1e-5)

    # Odd batch + small tiles: exercises the B % P pad and the ragged last
    # grid block (rows % tile_rows != 0) without any batch padding to tile_b.
    B2 = 301
    x2 = jax.random.normal(jax.random.PRNGKey(1), (B2, in_shape[2]), jnp.float32)
    out2 = jax.block_until_ready(nn_fc_forward(x2, params, in_shape, tile_rows=16))
    ref2 = nn_fc_reference(x2, params, in_shape)
    assert out2.shape == (B2, in_shape[0] // 2, in_shape[1], in_shape[2])
    assert jnp.allclose(out2, ref2, atol=1e-5, rtol=1e-5)

    # Even batch, default tiles: fully lane-dense packed path, no pad, no slice,
    # multi-step parallel grid.
    B3 = 256
    x3 = jax.random.normal(jax.random.PRNGKey(2), (B3, in_shape[2]), jnp.float32)
    out3 = jax.block_until_ready(nn_fc_forward(x3, params, in_shape))
    ref3 = nn_fc_reference(x3, params, in_shape)
    assert out3.shape == (B3, in_shape[0] // 2, in_shape[1], in_shape[2])
    assert jnp.allclose(out3, ref3, atol=1e-5, rtol=1e-5)

    print("KERNEL_OK")
</pallas_src>

<mosaic_0001>
module attributes {stable_mosaic.version = 11 : i64} {
  func.func @nn_fc_kernel(%arg0: i32, %arg1: memref<8x16xf32, #tpu.memory_space<vmem>>, %arg2: memref<16x6xf32, #tpu.memory_space<vmem>>, %arg3: memref<1x6xf32, #tpu.memory_space<vmem>>, %arg4: memref<6x128xf32, #tpu.memory_space<vmem>>, %arg5: memref<1x128xf32, #tpu.memory_space<vmem>>, %arg6: memref<8x128xf32, #tpu.memory_space<vmem>>) attributes {dimension_semantics = [#tpu.dimension_semantics<parallel>], iteration_bounds = array<i64: 1>, scalar_prefetch = 0 : i64, scratch_operands = 0 : i64, tpu.core_type = #tpu.core_type<tc>, window_params = [{transform_indices = @transform_0, window_bounds = array<i64: 8, 16>}, {pipeline_mode = #tpu.pipeline_mode<synchronous>, transform_indices = @transform_1, window_bounds = array<i64: 16, 6>}, {pipeline_mode = #tpu.pipeline_mode<synchronous>, transform_indices = @transform_2, window_bounds = array<i64: 1, 6>}, {pipeline_mode = #tpu.pipeline_mode<synchronous>, transform_indices = @transform_3, window_bounds = array<i64: 6, 128>}, {pipeline_mode = #tpu.pipeline_mode<synchronous>, transform_indices = @transform_4, window_bounds = array<i64: 1, 128>}, {transform_indices = @transform_5, window_bounds = array<i64: 8, 128>}]} {
    %c0 = arith.constant 0 : index
    %c0_0 = arith.constant 0 : index
    %0 = vector.load %arg1[%c0, %c0_0] : memref<8x16xf32, #tpu.memory_space<vmem>>, vector<8x16xf32>
    %c0_1 = arith.constant 0 : index
    %c0_2 = arith.constant 0 : index
    %1 = vector.load %arg2[%c0_1, %c0_2] : memref<16x6xf32, #tpu.memory_space<vmem>>, vector<16x6xf32>
    %cst = arith.constant dense<0.000000e+00> : vector<8x6xf32>
    %2 = tpu.matmul %0, %1, %cst {dimension_numbers = #tpu.dot_dimension_numbers<[1], [0], [0], [1], [0, 0, 1, 1], [], []>} : vector<8x16xf32>, vector<16x6xf32>, vector<8x6xf32> -> vector<8x6xf32>
    %c0_3 = arith.constant 0 : index
    %c0_4 = arith.constant 0 : index
    %3 = vector.load %arg3[%c0_3, %c0_4] : memref<1x6xf32, #tpu.memory_space<vmem>>, vector<1x6xf32>
    %4 = vector.broadcast %3 : vector<1x6xf32> to vector<8x6xf32>
    %5 = arith.addf %2, %4 : vector<8x6xf32>
    %cst_5 = arith.constant 0.000000e+00 : f32
    %6 = vector.broadcast %cst_5 : f32 to vector<8x6xf32>
    %7 = arith.maximumf %5, %6 : vector<8x6xf32>
    %c0_6 = arith.constant 0 : index
    %c0_7 = arith.constant 0 : index
    %8 = vector.load %arg4[%c0_6, %c0_7] : memref<6x128xf32, #tpu.memory_space<vmem>>, vector<6x128xf32>
    %cst_8 = arith.constant dense<0.000000e+00> : vector<8x128xf32>
    %9 = tpu.matmul %7, %8, %cst_8 {dimension_numbers = #tpu.dot_dimension_numbers<[1], [0], [0], [1], [0, 0, 1, 1], [], []>} : vector<8x6xf32>, vector<6x128xf32>, vector<8x128xf32> -> vector<8x128xf32>
    %c0_9 = arith.constant 0 : index
    %c0_10 = arith.constant 0 : index
    %10 = vector.load %arg5[%c0_9, %c0_10] : memref<1x128xf32, #tpu.memory_space<vmem>>, vector<1x128xf32>
    %11 = vector.broadcast %10 : vector<1x128xf32> to vector<8x128xf32>
    %12 = arith.addf %9, %11 : vector<8x128xf32>
    %c0_11 = arith.constant 0 : index
    %c0_12 = arith.constant 0 : index
    %13 = vector.load %arg6[%c0_11, %c0_12] : memref<8x128xf32, #tpu.memory_space<vmem>>, vector<8x128xf32>
    tpu.vector_store %arg6[%c0_11, %c0_12], %12 {strides = array<i32>} : memref<8x128xf32, #tpu.memory_space<vmem>>, vector<8x128xf32>,
    return
  }
  func.func @transform_0(%arg0: i32) -> (i32, i32) {
    %c0_i32 = arith.constant 0 : i32
    %c0_i32_0 = arith.constant 0 : i32
    return %arg0, %c0_i32 : i32, i32
  }
  func.func @transform_1(%arg0: i32) -> (i32, i32) {
    %c0_i32 = arith.constant 0 : i32
    %c0_i32_0 = arith.constant 0 : i32
    %c0_i32_1 = arith.constant 0 : i32
    return %c0_i32, %c0_i32_0 : i32, i32
  }
  func.func @transform_2(%arg0: i32) -> (i32, i32) {
    %c0_i32 = arith.constant 0 : i32
    %c0_i32_0 = arith.constant 0 : i32
    %c0_i32_1 = arith.constant 0 : i32
    return %c0_i32, %c0_i32_0 : i32, i32
  }
  func.func @transform_3(%arg0: i32) -> (i32, i32) {
    %c0_i32 = arith.constant 0 : i32
    %c0_i32_0 = arith.constant 0 : i32
    %c0_i32_1 = arith.constant 0 : i32
    return %c0_i32, %c0_i32_0 : i32, i32
  }
  func.func @transform_4(%arg0: i32) -> (i32, i32) {
    %c0_i32 = arith.constant 0 : i32
    %c0_i32_0 = arith.constant 0 : i32
    %c0_i32_1 = arith.constant 0 : i32
    return %c0_i32, %c0_i32_0 : i32, i32
  }
  func.func @transform_5(%arg0: i32) -> (i32, i32) {
    %c0_i32 = arith.constant 0 : i32
    %c0_i32_0 = arith.constant 0 : i32
    return %arg0, %c0_i32 : i32, i32
  }
}

</mosaic_0001>

<llo_original>
// kernel: tpu_custom_call.1
$region0: #{tpu_custom_call.1}
  #allocation0 [shape = 'u32[]', space=smem, size = 0x4, offset = 0x4, fixed_abs, tag = 'smem constant byte address 0x4 - core index']
  #allocation1 [shape = 'u32[144,128]{1,0:T(1,128)}', space=vmem, size = 0x12000, scoped, tag = 'internal scratch']
  %s0 = inlined_call_operand.vmem [shape: f32[1,16], index: 0, kind: input, shape index: {}]
  %s1 = inlined_call_operand.vmem [shape: f32[16,6], index: 1, kind: input, shape index: {}]
  %s2 = inlined_call_operand.vmem [shape: f32[1,6], index: 2, kind: input, shape index: {}]
  %s3 = inlined_call_operand.vmem [shape: f32[6,128], index: 3, kind: input, shape index: {}]
  %s4 = inlined_call_operand.vmem [shape: f32[1,128], index: 4, kind: input, shape index: {}]
  %s5 = inlined_call_operand.hbm [shape: f32[1,128], index: 5, kind: output, shape index: {}]
  %s6 = sld [smem:[#allocation0]]
  $region30: #{tpu_custom_call.1} parent=0
    _
  %s8 = ssub.s32 1, %s6
  %s9 = scalar_select 0, %s8, %s6
  $region1: #{tpu_custom_call.1} parent=0
    #allocation2 [shape = 'u8[4096]{0}', space=vmem, size = 0x1000, scoped, tag = 'output window, operand 0, single buffered']
    #allocation3 [shape = 's32[1]{0}', space=sflag, size = 0x4, scoped, tag = 'scoped memory for tpu_custom_call.1']
    %10 = vsyncpa [#allocation3], 0
    // Predicated region
    $region2: #{tpu_custom_call.1} parent=1 // pred_check
      _
    $region3: #{tpu_custom_call.1} parent=1 // pred_check_branch
      %12 = sbr.rel (0) target = $region5
    $region4: #{tpu_custom_call.1} parent=1 // pred_region
      _
    $region5: #{tpu_custom_call.1} parent=1 // pred_fallthru
      _
    // Predicated region
    $region6: #{tpu_custom_call.1} parent=1 // pred_check
      _
    $region7: #{tpu_custom_call.1} parent=1 // pred_check_branch
      %14 = sbr.rel (0) target = $region9
    $region8: #{tpu_custom_call.1} parent=1 // pred_region
      _
    $region9: #{tpu_custom_call.1} parent=1 // pred_fallthru
      _
    // Predicated region
    $region10: #{tpu_custom_call.1} parent=1 // pred_check
      _
    $region11: #{tpu_custom_call.1} parent=1 // pred_check_branch
      %16 = sbr.rel (0) target = $region13
    $region12: #{tpu_custom_call.1} parent=1 // pred_region
      _
    $region13: #{tpu_custom_call.1} parent=1 // pred_fallthru
      _
    // Predicated region
    $region14: #{tpu_custom_call.1} parent=1 // pred_check
      _
    $region15: #{tpu_custom_call.1} parent=1 // pred_check_branch
      %18 = sbr.rel (0) target = $region17
    $region16: #{tpu_custom_call.1} parent=1 // pred_region
      _
    $region17: #{tpu_custom_call.1} parent=1 // pred_fallthru
      _
    // Predicated region
    $region18: #{tpu_custom_call.1} parent=1 // pred_check
      _
    $region19: #{tpu_custom_call.1} parent=1 // pred_check_branch
      %20 = sbr.rel (0) target = $region21
    $region20: #{tpu_custom_call.1} parent=1 // pred_region
      _
    $region21: #{tpu_custom_call.1} parent=1 // pred_fallthru
      _
    %v21 = vld [vmem:[%s0] sm:$0xff]
    %v22 = vld [vmem:[%s1] sm:$0xff]
    %v23 = vld [vmem:[%s1 + $0x8] sm:$0xff]
    %v24 = vld [vmem:[%s2] sm:$0x1]
    %v26 = vlaneseq
    %v27 = vshrl.u32 %v26, 7
    %v28 = vsub.s32 0, %v27
    %v29 = vrot.slane %v24, %v28
    %vm31 = vcmask 130048
    %v33 = vsel %vm31, %v21, 0
    %35 = vmatprep.subr.mxu0 0.0
    %36 = vmatpush1.msra.mxu0 %v22
    %37 = vmatprep.subr.mxu0 0.0
    %38 = vmatpush1.msra.mxu0 %v23
    %39 = vmatprep.subr.mxu0 0.0
    %40 = vmatpush1.msra.mxu0 0.0
    %41 = vmatprep.subr.mxu0 0.0
    %42 = vmatpush1.msra.mxu0 0.0
    %43 = vmatprep.subr.mxu0 0.0
    %44 = vmatpush1.msra.mxu0 0.0
    %45 = vmatprep.subr.mxu0 0.0
    %46 = vmatpush1.msra.mxu0 0.0
    %47 = vmatprep.subr.mxu0 0.0
    %48 = vmatpush1.msra.mxu0 0.0
    %49 = vmatprep.subr.mxu0 0.0
    %50 = vmatpush1.msra.mxu0 0.0
    %51 = vmatprep.subr.mxu0 0.0
    %52 = vmatpush1.msra.mxu0 0.0
    %53 = vmatprep.subr.mxu0 0.0
    %54 = vmatpush1.msra.mxu0 0.0
    %55 = vmatprep.subr.mxu0 0.0
    %56 = vmatpush1.msra.mxu0 0.0
    %57 = vmatprep.subr.mxu0 0.0
    %58 = vmatpush1.msra.mxu0 0.0
    %59 = vmatprep.subr.mxu0 0.0
    %60 = vmatpush1.msra.mxu0 0.0
    %61 = vmatprep.subr.mxu0 0.0
    %62 = vmatpush1.msra.mxu0 0.0
    %63 = vmatprep.subr.mxu0 0.0
    %64 = vmatpush1.msra.mxu0 0.0
    %65 = vmatprep.subr.mxu0 0.0
    %66 = vmatpush1.msra.mxu0 0.0
    %67 = vmatprep.subr.mxu0 0.0
    %68 = vmatpush1.msra.mxu0 0.0
    %69 = vmatprep.subr.mxu0 0.0
    %70 = vmatpush1.msra.mxu0 0.0
    %71 = vmatprep.subr.mxu0 0.0
    %72 = vmatpush1.msra.mxu0 0.0
    %73 = vmatprep.subr.mxu0 0.0
    %74 = vmatpush1.msra.mxu0 0.0
    %75 = vmatprep.subr.mxu0 0.0
    %76 = vmatpush1.msra.mxu0 0.0
    %77 = vmatprep.subr.mxu0 0.0
    %78 = vmatpush1.msra.mxu0 0.0
    %79 = vmatprep.subr.mxu0 0.0
    %80 = vmatpush1.msra.mxu0 0.0
    %81 = vmatprep.subr.mxu0 0.0
    %82 = vmatpush1.msra.mxu0 0.0
    %83 = vmatprep.subr.mxu0 0.0
    %84 = vmatpush1.msra.mxu0 0.0
    %85 = vmatprep.subr.mxu0 0.0
    %86 = vmatpush1.msra.mxu0 0.0
    %87 = vmatprep.subr.mxu0 0.0
    %88 = vmatpush1.msra.mxu0 0.0
    %89 = vmatprep.subr.mxu0 0.0
    %90 = vmatpush1.msra.mxu0 0.0
    %91 = vmatprep.subr.mxu0 0.0
    %92 = vmatpush1.msra.mxu0 0.0
    %93 = vmatprep.subr.mxu0 0.0
    %94 = vmatpush1.msra.mxu0 0.0
    %95 = vmatprep.subr.mxu0 0.0
    %96 = vmatpush1.msra.mxu0 0.0
    %97 = vmatprep.subr.mxu0 0.0
    %98 = vmatpush1.msra.mxu0 0.0
    %99 = vmatprep.mubr.f32.mxu0 0.0
    %100 = vmatmul.mubr.f32.gmra.mrb[0].mxu0 %v33
    %v101 = vpop.f32.mrb[0].mxu0
    %v102 = vadd.f32 %v29, %v101
    %v103 = vpop.f32.mrb[0].mxu0
    %104 = vdwg.mxu0
    %v105 = vmax.f32 %v102, 0.0
    %v106 = vld [vmem:[%s3] sm:$0x3f]
    %v107 = vld [vmem:[%s4] sm:$0x1]
    %v109 = vlaneseq
    %v110 = vshrl.u32 %v109, 7
    %v111 = vsub.s32 0, %v110
    %v112 = vrot.slane %v107, %v111
    %vm114 = vcmask 48128
    %v116 = vsel %vm114, %v105, 0
    %vm118 = vcmask 1045504
    %v120 = vsel %vm118, %v106, 0
    %122 = vmatprep.subr.mxu0 0.0
    %123 = vmatpush1.msra.mxu0 %v120
    %124 = vmatprep.subr.mxu0 0.0
    %125 = vmatpush1.msra.mxu0 0.0
    %126 = vmatprep.subr.mxu0 0.0
    %127 = vmatpush1.msra.mxu0 0.0
    %128 = vmatprep.subr.mxu0 0.0
    %129 = vmatpush1.msra.mxu0 0.0
    %130 = vmatprep.subr.mxu0 0.0
    %131 = vmatpush1.msra.mxu0 0.0
    %132 = vmatprep.subr.mxu0 0.0
    %133 = vmatpush1.msra.mxu0 0.0
    %134 = vmatprep.subr.mxu0 0.0
    %135 = vmatpush1.msra.mxu0 0.0
    %136 = vmatprep.subr.mxu0 0.0
    %137 = vmatpush1.msra.mxu0 0.0
    %138 = vmatprep.subr.mxu0 0.0
    %139 = vmatpush1.msra.mxu0 0.0
    %140 = vmatprep.subr.mxu0 0.0
    %141 = vmatpush1.msra.mxu0 0.0
    %142 = vmatprep.subr.mxu0 0.0
    %143 = vmatpush1.msra.mxu0 0.0
    %144 = vmatprep.subr.mxu0 0.0
    %145 = vmatpush1.msra.mxu0 0.0
    %146 = vmatprep.subr.mxu0 0.0
    %147 = vmatpush1.msra.mxu0 0.0
    %148 = vmatprep.subr.mxu0 0.0
    %149 = vmatpush1.msra.mxu0 0.0
    %150 = vmatprep.subr.mxu0 0.0
    %151 = vmatpush1.msra.mxu0 0.0
    %152 = vmatprep.subr.mxu0 0.0
    %153 = vmatpush1.msra.mxu0 0.0
    %154 = vmatprep.subr.mxu0 0.0
    %155 = vmatpush1.msra.mxu0 0.0
    %156 = vmatprep.subr.mxu0 0.0
    %157 = vmatpush1.msra.mxu0 0.0
    %158 = vmatprep.subr.mxu0 0.0
    %159 = vmatpush1.msra.mxu0 0.0
    %160 = vmatprep.subr.mxu0 0.0
    %161 = vmatpush1.msra.mxu0 0.0
    %162 = vmatprep.subr.mxu0 0.0
    %163 = vmatpush1.msra.mxu0 0.0
    %164 = vmatprep.subr.mxu0 0.0
    %165 = vmatpush1.msra.mxu0 0.0
    %166 = vmatprep.subr.mxu0 0.0
    %167 = vmatpush1.msra.mxu0 0.0
    %168 = vmatprep.subr.mxu0 0.0
    %169 = vmatpush1.msra.mxu0 0.0
    %170 = vmatprep.subr.mxu0 0.0
    %171 = vmatpush1.msra.mxu0 0.0
    %172 = vmatprep.subr.mxu0 0.0
    %173 = vmatpush1.msra.mxu0 0.0
    %174 = vmatprep.subr.mxu0 0.0
    %175 = vmatpush1.msra.mxu0 0.0
    %176 = vmatprep.subr.mxu0 0.0
    %177 = vmatpush1.msra.mxu0 0.0
    %178 = vmatprep.subr.mxu0 0.0
    %179 = vmatpush1.msra.mxu0 0.0
    %180 = vmatprep.subr.mxu0 0.0
    %181 = vmatpush1.msra.mxu0 0.0
    %182 = vmatprep.subr.mxu0 0.0
    %183 = vmatpush1.msra.mxu0 0.0
    %184 = vmatprep.subr.mxu0 0.0
    %185 = vmatpush1.msra.mxu0 0.0
    %186 = vmatprep.mubr.f32.mxu0 0.0
    %187 = vmatmul.mubr.f32.gmra.mrb[0].mxu0 %v116
    %v188 = vpop.f32.mrb[0].mxu0
    %v189 = vadd.f32 %v112, %v188
    %v190 = vpop.f32.mrb[0].mxu0
    %191 = vdwg.mxu0
    %192 = vst [vmem:[#allocation2] sm:$0xff] %v189
    // Predicated region
    $region22: #{tpu_custom_call.1} parent=1 // pred_check
      _
    $region23: #{tpu_custom_call.1} parent=1 // pred_check_branch
      %194 = sbr.rel (0) target = $region25
    $region24: #{tpu_custom_call.1} parent=1 // pred_region
      %s196 = ssub.s32 128, 16
      %197 = vsyncadd [#allocation3], %s196
      %s198 = sshll.u32 [#allocation2], 4
      %s199 = int_to_ptr.vmem [resolvable:$true] %s198
      %204 = dma.vmem_to_hbm [thread:$0]  %s199, 16, %s5, [#allocation3], 16, 16, 1
    $region25: #{tpu_custom_call.1} parent=1 // pred_fallthru
      _
    // Predicated region
    $region26: #{tpu_custom_call.1} parent=1 // pred_check
      _
    $region27: #{tpu_custom_call.1} parent=1 // pred_check_branch
      %206 = sbr.rel (0) target = $region29
    $region28: #{tpu_custom_call.1} parent=1 // pred_region
      %207 = dma.done [#allocation3], 128
    $region29: #{tpu_custom_call.1} parent=1 // pred_fallthru
      _
    %208 = vsyncpa [#allocation3], 1

</llo_original>
